<compile_context>
chip_gen: v5e
topology: v5e:2x2
jax: 0.10.0
libtpu: 0.0.40
codegen_flags: <defaults>
</compile_context>

<pallas_src>
import jax
import jax.numpy as jnp
from jax.experimental import pallas as pl
from jax.experimental.pallas import tpu as pltpu


# ---------------------------------------------------------------------------
# Kernels
# ---------------------------------------------------------------------------
def _ws_kernel_direct(x_ref, w_ref, o_ref):
    # x_ref: (TB, TC, HW)   w_ref: (TB, Cw_blk, HW)   o_ref: (TB, 1, TC)
    # Full spatial reduction per step -> write the output block directly.
    prod = (x_ref[...] * w_ref[...]).astype(jnp.float32)   # one cast, on product
    s = jnp.sum(prod, axis=-1)                              # (TB, TC) f32, XLU
    o_ref[...] = s[:, None, :].astype(o_ref.dtype)


def _ws_kernel_accum(x_ref, w_ref, o_ref, acc_ref):
    # x_ref: (TB, TC, THW)  w_ref: (TB, Cw_blk, THW)  o_ref: (TB, 1, TC)
    # acc_ref: (TB, TC) f32 scratch, resident across the spatial grid axis.
    k = pl.program_id(2)

    @pl.when(k == 0)
    def _init():
        acc_ref[...] = jnp.zeros_like(acc_ref)

    prod = (x_ref[...] * w_ref[...]).astype(jnp.float32)
    acc_ref[...] += jnp.sum(prod, axis=-1)

    @pl.when(k == pl.num_programs(2) - 1)
    def _finalize():
        o_ref[...] = acc_ref[...][:, None, :].astype(o_ref.dtype)


# ---------------------------------------------------------------------------
# Trace-time tiling heuristics (pure Python)
# ---------------------------------------------------------------------------
def _round_up(v, m):
    return -(-v // m) * m


def _tile_bytes(tb, tc, thw, itemsize):
    # VMEM footprint of a (tb, tc, thw) tile incl. (8,128) sublane/lane padding.
    return tb * _round_up(max(tc, 1), 8) * _round_up(max(thw, 1), 128) * itemsize


def _vmem_capacity_bytes():
    try:
        return int(pltpu.get_tpu_info().vmem_capacity_bytes)
    except Exception:
        return 64 << 20  # conservative default: v7x per-TC physical VMEM


def _legal_channel_tiles(c):
    """Channel tiles legal both as the sublane dim of the (TB, TC, *) input
    blocks and as the lane dim of the (TB, 1, TC) output block: the full C,
    or any multiple-of-128 divisor of C."""
    tiles = {c}
    if c % 128 == 0:
        for k in range(1, c // 128 + 1):
            cand = 128 * k
            if c % cand == 0:
                tiles.add(cand)
    return sorted(tiles)


_MIN_SPLIT_BYTES = 1 << 20  # only force a >=2-cell grid when a cell is >=1 MiB


def _choose_tiling(n, c, hw, itemsize, budget):
    """Returns (mode, TB, TC, THW, HWP), mode in {"direct", "accum"}."""
    ctiles = _legal_channel_tiles(c)

    # ---- direct path: full spatial extent per grid step --------------------
    fits = [t for t in ctiles if _tile_bytes(1, t, hw, itemsize) <= budget]
    if fits:
        tc = max(fits)
        tb = 1
        for cand in range(1, n + 1):
            if n % cand == 0 and _tile_bytes(cand, tc, hw, itemsize) <= budget:
                tb = cand
        # Give dual-TC chips (v7x) at least 2 parallel grid cells when the
        # work is non-trivial (costs only ~0.35us extra on single-TC chips).
        if (n // tb) * (c // tc) == 1 and \
                _tile_bytes(tb, tc, hw, itemsize) >= _MIN_SPLIT_BYTES:
            if n % 2 == 0:
                tb = n // 2
            else:
                smaller = [t for t in fits if t < tc]
                if smaller:
                    tc = max(smaller)
        return "direct", tb, tc, hw, hw

    # ---- accumulating fallback: spatial axis tiled + zero-padded -----------
    hwp = _round_up(hw, 128)
    fits_b = [t for t in ctiles if _tile_bytes(1, t, 128, itemsize) <= budget]
    tc = max(fits_b) if fits_b else min(ctiles)
    thw = 128
    m = hwp // 128
    for d in range(1, m + 1):
        if m % d == 0 and _tile_bytes(1, tc, 128 * d, itemsize) <= budget:
            thw = max(thw, 128 * d)
    tb = 1
    for cand in range(1, n + 1):
        if n % cand == 0 and _tile_bytes(cand, tc, thw, itemsize) <= budget:
            tb = cand
    return "accum", tb, tc, thw, hwp


# ---------------------------------------------------------------------------
# Wrapper
# ---------------------------------------------------------------------------
def weighted_sum_2d(x, weights):
    """Pallas TPU implementation of WeightedSum2d.forward((x, weights))."""
    n, c, h, w = x.shape
    nw, cw, hw_, ww = weights.shape
    assert h == hw_ and w == ww, (
        "err: h, w of x({}) and weights({}) must be the same".format(
            x.shape, weights.shape))
    assert nw == n, "err: batch dims of x and weights must match"
    assert cw in (1, c), (
        "err: weights channel dim must be 1 or C, got {} vs C={}".format(cw, c))

    hw = h * w
    out_dtype = jnp.result_type(x.dtype, weights.dtype)
    itemsize = max(jnp.dtype(x.dtype).itemsize, jnp.dtype(weights.dtype).itemsize)

    cap = _vmem_capacity_bytes()
    budget = min(16 << 20, cap // 8)  # ~8 MiB/tile on v7x, 16 MiB on v5e/v6e

    mode, tb, tc, thw, hwp = _choose_tiling(n, c, hw, itemsize, budget)
    cw_blk = tc if cw == c else 1

    # Flatten spatial dims; NO HBM broadcast of weights over channels.
    # (Note: for C < 8 the channel/sublane dim pads to 8 inside VMEM only —
    #  HBM traffic is unaffected since the DMA stays contiguous.)
    x_flat = x.reshape(n, c, hw)
    w_flat = weights.reshape(n, cw, hw)
    if hwp != hw:
        # Accum fallback with HW not a multiple of 128: zero-pad the spatial
        # axis so every spatial tile is lane-dense; zeros add nothing to sums.
        x_flat = jnp.pad(x_flat, ((0, 0), (0, 0), (0, hwp - hw)))
        w_flat = jnp.pad(w_flat, ((0, 0), (0, 0), (0, hwp - hw)))

    # VMEM limit derived from the real working set (2 pipeline buffers per
    # operand + output blocks + f32 scratch), clamped under physical VMEM.
    x_tile = _tile_bytes(tb, tc, thw, jnp.dtype(x.dtype).itemsize)
    w_tile = _tile_bytes(tb, cw_blk, thw, jnp.dtype(weights.dtype).itemsize)
    o_tile = _tile_bytes(tb, 1, tc, jnp.dtype(out_dtype).itemsize)
    acc_tile = _tile_bytes(1, tb, tc, 4) if mode == "accum" else 0
    need = 2 * (x_tile + w_tile + o_tile) + acc_tile + (2 << 20)
    vmem_limit = int(min(max(need, 32 << 20), int(cap * 0.9)))

    if mode == "direct":
        grid = (n // tb, c // tc)
        x_spec = pl.BlockSpec((tb, tc, hw), lambda i, j: (i, j, 0))
        if cw == c:
            w_spec = pl.BlockSpec((tb, tc, hw), lambda i, j: (i, j, 0))
        else:
            w_spec = pl.BlockSpec((tb, 1, hw), lambda i, j: (i, 0, 0))
        out_spec = pl.BlockSpec((tb, 1, tc), lambda i, j: (i, 0, j))
        kernel = _ws_kernel_direct
        scratch = []
        dim_sem = ("parallel", "parallel")
    else:
        grid = (n // tb, c // tc, hwp // thw)
        x_spec = pl.BlockSpec((tb, tc, thw), lambda i, j, k: (i, j, k))
        if cw == c:
            w_spec = pl.BlockSpec((tb, tc, thw), lambda i, j, k: (i, j, k))
        else:
            w_spec = pl.BlockSpec((tb, 1, thw), lambda i, j, k: (i, 0, k))
        out_spec = pl.BlockSpec((tb, 1, tc), lambda i, j, k: (i, 0, j))
        kernel = _ws_kernel_accum
        scratch = [pltpu.VMEM((tb, tc), jnp.float32)]
        dim_sem = ("parallel", "parallel", "arbitrary")

    out = pl.pallas_call(
        kernel,
        out_shape=jax.ShapeDtypeStruct((n, 1, c), out_dtype),
        grid_spec=pltpu.PrefetchScalarGridSpec(
            num_scalar_prefetch=0,
            grid=grid,
            in_specs=[x_spec, w_spec],
            out_specs=out_spec,
            scratch_shapes=scratch,
        ),
        compiler_params=pltpu.CompilerParams(
            dimension_semantics=dim_sem,
            vmem_limit_bytes=vmem_limit,
        ),
    )(x_flat, w_flat)

    return out.reshape(n, c, 1, 1)


# ---------------------------------------------------------------------------
# Self-test
# ---------------------------------------------------------------------------
if __name__ == "__main__":
    key = jax.random.PRNGKey(0)
    kx, kw1, kw2, kx3, kw3 = jax.random.split(key, 5)

    # Case 1: per-pixel attention map shared across channels (Cw = 1).
    N, C, H, W = 2, 4, 16, 16
    x = jax.random.normal(kx, (N, C, H, W), dtype=jnp.float32)
    w1 = jax.random.uniform(kw1, (N, 1, H, W), dtype=jnp.float32)
    out1 = jax.block_until_ready(weighted_sum_2d(x, w1))
    ref1 = jnp.sum(x * w1, axis=(2, 3)).reshape(N, C, 1, 1)
    assert out1.shape == (N, C, 1, 1), out1.shape
    assert jnp.allclose(out1, ref1, atol=1e-5, rtol=1e-5), "mismatch (Cw=1)"

    # Case 2: full per-channel weights (Cw = C).
    w2 = jax.random.uniform(kw2, (N, C, H, W), dtype=jnp.float32)
    out2 = jax.block_until_ready(weighted_sum_2d(x, w2))
    ref2 = jnp.sum(x * w2, axis=(2, 3)).reshape(N, C, 1, 1)
    assert out2.shape == (N, C, 1, 1), out2.shape
    assert jnp.allclose(out2, ref2, atol=1e-5, rtol=1e-5), "mismatch (Cw=C)"

    # Case 3: larger channel count with a non-128-multiple spatial extent
    # (7x7 = 49), exercising the full-HW lane dim on the direct path.
    N3, C3, H3, W3 = 2, 256, 7, 7
    x3 = jax.random.normal(kx3, (N3, C3, H3, W3), dtype=jnp.float32)
    w3 = jax.random.uniform(kw3, (N3, 1, H3, W3), dtype=jnp.float32)
    out3 = jax.block_until_ready(weighted_sum_2d(x3, w3))
    ref3 = jnp.sum(x3 * w3, axis=(2, 3)).reshape(N3, C3, 1, 1)
    assert out3.shape == (N3, C3, 1, 1), out3.shape
    assert jnp.allclose(out3, ref3, atol=1e-4, rtol=1e-4), "mismatch (odd HW)"

    print("KERNEL_OK")
</pallas_src>

<mosaic_0001>
module attributes {stable_mosaic.version = 11 : i64} {
  func.func @_ws_kernel_direct(%arg0: i32, %arg1: i32, %arg2: memref<2x4x256xf32, #tpu.memory_space<vmem>>, %arg3: memref<2x1x256xf32, #tpu.memory_space<vmem>>, %arg4: memref<2x1x4xf32, #tpu.memory_space<vmem>>) attributes {dimension_semantics = [#tpu.dimension_semantics<parallel>, #tpu.dimension_semantics<parallel>], iteration_bounds = array<i64: 1, 1>, scalar_prefetch = 0 : i64, scratch_operands = 0 : i64, tpu.core_type = #tpu.core_type<tc>, window_params = [{transform_indices = @transform_0, window_bounds = array<i64: 2, 4, 256>}, {transform_indices = @transform_1, window_bounds = array<i64: 2, 1, 256>}, {transform_indices = @transform_2, window_bounds = array<i64: 2, 1, 4>}]} {
    %c0 = arith.constant 0 : index
    %c0_0 = arith.constant 0 : index
    %c0_1 = arith.constant 0 : index
    %0 = vector.load %arg2[%c0, %c0_0, %c0_1] : memref<2x4x256xf32, #tpu.memory_space<vmem>>, vector<2x4x256xf32>
    %c0_2 = arith.constant 0 : index
    %c0_3 = arith.constant 0 : index
    %c0_4 = arith.constant 0 : index
    %1 = vector.load %arg3[%c0_2, %c0_3, %c0_4] : memref<2x1x256xf32, #tpu.memory_space<vmem>>, vector<2x1x256xf32>
    %2 = vector.broadcast %1 : vector<2x1x256xf32> to vector<2x4x256xf32>
    %3 = arith.mulf %0, %2 : vector<2x4x256xf32>
    %cst = arith.constant dense<0.000000e+00> : vector<2x4xf32>
    %4 = vector.multi_reduction <add>, %3, %cst [2] : vector<2x4x256xf32> to vector<2x4xf32>
    %5 = vector.shape_cast %4 : vector<2x4xf32> to vector<2x1x4xf32>
    %c0_5 = arith.constant 0 : index
    %c0_6 = arith.constant 0 : index
    %c0_7 = arith.constant 0 : index
    %6 = vector.load %arg4[%c0_5, %c0_6, %c0_7] : memref<2x1x4xf32, #tpu.memory_space<vmem>>, vector<2x1x4xf32>
    tpu.vector_store %arg4[%c0_5, %c0_6, %c0_7], %5 {strides = array<i32>} : memref<2x1x4xf32, #tpu.memory_space<vmem>>, vector<2x1x4xf32>,
    return
  }
  func.func @transform_0(%arg0: i32, %arg1: i32) -> (i32, i32, i32) {
    %c0_i32 = arith.constant 0 : i32
    %c0_i32_0 = arith.constant 0 : i32
    return %arg0, %arg1, %c0_i32 : i32, i32, i32
  }
  func.func @transform_1(%arg0: i32, %arg1: i32) -> (i32, i32, i32) {
    %c0_i32 = arith.constant 0 : i32
    %c0_i32_0 = arith.constant 0 : i32
    %c0_i32_1 = arith.constant 0 : i32
    return %arg0, %c0_i32, %c0_i32_0 : i32, i32, i32
  }
  func.func @transform_2(%arg0: i32, %arg1: i32) -> (i32, i32, i32) {
    %c0_i32 = arith.constant 0 : i32
    %c0_i32_0 = arith.constant 0 : i32
    return %arg0, %c0_i32, %arg1 : i32, i32, i32
  }
}

</mosaic_0001>

<llo_original>
// kernel: tpu_custom_call.1
$region0: #{tpu_custom_call.1}
  #allocation0 [shape = 'u32[]', space=smem, size = 0x4, offset = 0x4, fixed_abs, tag = 'smem constant byte address 0x4 - core index']
  #allocation1 [shape = 'u32[72,128]{1,0:T(1,128)}', space=vmem, size = 0x9000, scoped, tag = 'internal scratch']
  %s0 = inlined_call_operand.hbm [shape: f32[2,4,256], index: 0, kind: input, shape index: {}]
  %s1 = inlined_call_operand.hbm [shape: f32[2,1,256], index: 1, kind: input, shape index: {}]
  %s2 = inlined_call_operand.hbm [shape: f32[2,1,4], index: 2, kind: output, shape index: {}]
  %s3 = sld [smem:[#allocation0]]
  $region26: #{tpu_custom_call.1} parent=0
    _
  %s5 = ssub.s32 1, %s3
  %s6 = scalar_select 0, %s5, %s3
  $region1: #{tpu_custom_call.1} parent=0
    #allocation2 [shape = 'u8[8192]{0}', space=vmem, size = 0x2000, scoped, tag = 'input window, operand 0, single buffered']
    #allocation3 [shape = 's32[1]{0}', space=sflag, size = 0x4, scoped, tag = 'scoped memory for tpu_custom_call.1']
    #allocation4 [shape = 's32[1]{0}', space=sflag, size = 0x4, scoped, tag = 'scoped memory for tpu_custom_call.1']
    #allocation5 [shape = 'u8[2048]{0}', space=vmem, size = 0x800, scoped, tag = 'input window, operand 1, single buffered']
    #allocation6 [shape = 's32[1]{0}', space=sflag, size = 0x4, scoped, tag = 'scoped memory for tpu_custom_call.1']
    #allocation7 [shape = 'u8[1024]{0}', space=vmem, size = 0x400, scoped, tag = 'output window, operand 0, single buffered']
    %7 = vsyncpa [#allocation3], 0
    %8 = vsyncpa [#allocation6], 0
    %9 = vsyncpa [#allocation4], 0
    // Predicated region
    $region2: #{tpu_custom_call.1} parent=1 // pred_check
      _
    $region3: #{tpu_custom_call.1} parent=1 // pred_check_branch
      %11 = sbr.rel (0) target = $region5
    $region4: #{tpu_custom_call.1} parent=1 // pred_region
      %13 = vsyncadd [#allocation3], 0
      %s14 = sshll.u32 %s0, 4
      %s15 = int_to_ptr.hbm [resolvable:$true] %s14
      %s16 = sshll.u32 [#allocation2], 4
      %s17 = int_to_ptr.vmem [resolvable:$true] %s16
      %22 = dma.hbm_to_vmem [thread:$0]  %s15, 256, %s17, [#allocation3], 128, 128, 8
    $region5: #{tpu_custom_call.1} parent=1 // pred_fallthru
      _
    // Predicated region
    $region6: #{tpu_custom_call.1} parent=1 // pred_check
      _
    $region7: #{tpu_custom_call.1} parent=1 // pred_check_branch
      %24 = sbr.rel (0) target = $region9
    $region8: #{tpu_custom_call.1} parent=1 // pred_region
      %26 = vsyncadd [#allocation6], 0
      %s27 = sshll.u32 %s1, 4
      %s28 = int_to_ptr.hbm [resolvable:$true] %s27
      %s29 = sshll.u32 [#allocation5], 4
      %s30 = int_to_ptr.vmem [resolvable:$true] %s29
      %35 = dma.hbm_to_vmem [thread:$0]  %s28, 64, %s30, [#allocation6], 32, 32, 2
    $region9: #{tpu_custom_call.1} parent=1 // pred_fallthru
      _
    // Predicated region
    $region10: #{tpu_custom_call.1} parent=1 // pred_check
      _
    $region11: #{tpu_custom_call.1} parent=1 // pred_check_branch
      %37 = sbr.rel (0) target = $region13
    $region12: #{tpu_custom_call.1} parent=1 // pred_region
      %39 = dma.done [#allocation3], 256
    $region13: #{tpu_custom_call.1} parent=1 // pred_fallthru
      _
    // Predicated region
    $region14: #{tpu_custom_call.1} parent=1 // pred_check
      _
    $region15: #{tpu_custom_call.1} parent=1 // pred_check_branch
      %41 = sbr.rel (0) target = $region17
    $region16: #{tpu_custom_call.1} parent=1 // pred_region
      %43 = dma.done [#allocation6], 64
    $region17: #{tpu_custom_call.1} parent=1 // pred_fallthru
      _
    %v44 = vld [vmem:[#allocation2] sm:$0xff]
    %v45 = vld [vmem:[#allocation2 + $0x8] sm:$0xff]
    %v46 = vld [vmem:[#allocation5] sm:$0x3]
    %v47 = vld [vmem:[#allocation5 + $0x2] sm:$0x3]
    %v50 = vperm.slane %v46, 0
    %v51 = vperm.slane %v46, 1
    %v52 = vperm.slane %v47, 0
    %v53 = vperm.slane %v47, 1
    %v54 = vrot.slane %v51, 4
    %v55 = vrot.slane %v53, 4
    %vm56 = vcmask 1043456
    %v57 = vsel %vm56, %v50, %v54
    %v58 = vsel %vm56, %v52, %v55
    %v61 = vmul.f32 %v44, %v57
    %v62 = vmul.f32 %v45, %v58
    %65 = vst [vmem:[#allocation1] ss:$2 sm:$0xff] %v61
    %v66 = vld.sshfl [vmem:[#allocation1] sm:$0xff pattern:$0x75316420]
    %v67 = vld.sshfl [vmem:[#allocation1 + $0x8] sm:$0xff pattern:$0x75316420]
    %s68 = scalar_lea.vmem [#allocation1], 16
    %69 = vst [vmem:[%s68] ss:$2 sm:$0xff] %v62
    %v70 = vld.sshfl [vmem:[#allocation1 + $0x10] sm:$0xff pattern:$0x75316420]
    %v71 = vld.sshfl [vmem:[#allocation1 + $0x18] sm:$0xff pattern:$0x75316420]
    %v76 = vsel %vm56, %v66, 0.0
    %v77 = vsel %vm56, %v67, 0.0
    %v78 = vadd.f32 %v76, %v77
    %79 = vadd.xlane.f32.xlu0 %v78
    %v80 = vpop.xlane.xlu0 %79
    %v81 = vsel %vm56, %v70, 0.0
    %v82 = vsel %vm56, %v71, 0.0
    %v83 = vadd.f32 %v81, %v82
    %84 = vadd.xlane.f32.xlu0 %v83
    %v85 = vpop.xlane.xlu0 %84
    %v88 = vlaneseq
    %v89 = vand.u32 %v88, 127
    %v90 = vperm.slane %v80, %v89
    %v91 = vperm.slane %v85, %v89
    %vm94 = vcmask 24576
    %95 = vst.msk [vmem:[#allocation7] sm:$0x1] %vm94, %v90
    %96 = vst.msk [vmem:[#allocation7 + $0x1] sm:$0x1] %vm94, %v91
    // Predicated region
    $region18: #{tpu_custom_call.1} parent=1 // pred_check
      _
    $region19: #{tpu_custom_call.1} parent=1 // pred_check_branch
      %98 = sbr.rel (0) target = $region21
    $region20: #{tpu_custom_call.1} parent=1 // pred_region
      %100 = vsyncadd [#allocation4], 0
      %s101 = sshll.u32 [#allocation7], 4
      %s102 = int_to_ptr.vmem [resolvable:$true] %s101
      %s103 = sshll.u32 %s2, 4
      %s104 = int_to_ptr.hbm [resolvable:$true] %s103
      %109 = dma.vmem_to_hbm [thread:$0]  %s102, 32, %s104, [#allocation4], 16, 16, 1
    $region21: #{tpu_custom_call.1} parent=1 // pred_fallthru
      _
    // Predicated region
    $region22: #{tpu_custom_call.1} parent=1 // pred_check
      _
    $region23: #{tpu_custom_call.1} parent=1 // pred_check_branch
      %111 = sbr.rel (0) target = $region25
    $region24: #{tpu_custom_call.1} parent=1 // pred_region
      %113 = dma.done [#allocation4], 32
    $region25: #{tpu_custom_call.1} parent=1 // pred_fallthru
      _
    %114 = vsyncpa [#allocation3], 1
    %115 = vsyncpa [#allocation6], 1
    %116 = vsyncpa [#allocation4], 1

</llo_original>
